<compile_context>
chip_gen: v5e
topology: v5e:2x2
jax: 0.10.0
libtpu: 0.0.40
codegen_flags: <defaults>
</compile_context>

<pallas_src>
import functools

import jax
import jax.numpy as jnp
from jax.experimental import pallas as pl
from jax.experimental.pallas import tpu as pltpu


_SQRT_2_OVER_PI = 0.7978845608028654
_VMEM_LIMIT = 32 * 1024 * 1024  # safe scoped-VMEM on v5e/v6e (128 MiB phys) and v7x (64 MiB)
_LN_EPS = 1e-5


def _round_up(x, m):
    return (x + m - 1) // m * m


def _gelu_tanh(x):
    # TODO(synk): PyTorch nn.GELU defaults to the exact erf form; the tanh
    # approximation is used here (EUP-friendly, small numeric diff).
    return 0.5 * x * (1.0 + jnp.tanh(_SQRT_2_OVER_PI * (x + 0.044715 * x * x * x)))


def _layernorm(x_f32, g, b, eps):
    mu = jnp.mean(x_f32, axis=-1, keepdims=True)
    xc = x_f32 - mu
    var = jnp.mean(xc * xc, axis=-1, keepdims=True)
    return xc * jax.lax.rsqrt(var + eps) * g + b


# ----------------------------------------------------------------------------
# Conv-as-matmul kernel: bf16 MXU, f32 bias epilogue, no K tiling / no scratch
# ----------------------------------------------------------------------------
def _conv_matmul_kernel(x_ref, w_ref, b_ref, o_ref):
    acc = jnp.dot(x_ref[...], w_ref[...], preferred_element_type=jnp.float32)
    o_ref[...] = (acc + b_ref[...]).astype(o_ref.dtype)


def conv_matmul(cols, w, b, *, out_dtype=jnp.bfloat16):
    """(M, K) bf16 @ (K, N) bf16 + b, single-K-block (all conv K fit VMEM)."""
    M, K = cols.shape
    Kw, N = w.shape
    assert Kw == K, (Kw, K)

    tm = min(256, _round_up(M, 8))
    M_pad = _round_up(M, tm)
    if M_pad != M:
        cols = jnp.pad(cols, ((0, M_pad - M), (0, 0)))
    rows = M_pad // tm
    # Give v7x a second parallel unit when the M axis collapses to one row.
    tn = 128 if (rows == 1 and N > 128 and N % 128 == 0) else N
    grid = (rows, N // tn)

    out = pl.pallas_call(
        _conv_matmul_kernel,
        out_shape=jax.ShapeDtypeStruct((M_pad, N), out_dtype),
        grid=grid,
        in_specs=[pl.BlockSpec((tm, K), lambda i, j: (i, 0)),
                  pl.BlockSpec((K, tn), lambda i, j: (0, j)),
                  pl.BlockSpec((1, tn), lambda i, j: (0, j))],
        out_specs=pl.BlockSpec((tm, tn), lambda i, j: (i, j)),
        compiler_params=pltpu.CompilerParams(
            dimension_semantics=("parallel", "parallel"),
            vmem_limit_bytes=_VMEM_LIMIT,
        ),
    )(cols, w, b)
    if M_pad != M:
        out = out[:M]
    return out


def conv2d(x_nhwc, wmat, bias, *, kernel_size, stride, cout, out_dtype=jnp.bfloat16):
    """Conv2d with padding = kernel_size // 2 (matches the PyTorch `conv` helper).

    x_nhwc: (B, H, W, Cin); wmat: (K_pad, Cout) bf16, K_pad = round_up(k*k*Cin, 128).
    """
    # TODO(synk): im2col is still materialized in HBM (k^2 duplication); folding
    # the tap loop into the matmul contraction needs strided-window DMA that
    # BlockSpec index_maps cannot express, so it is left as JAX glue here.
    B, H, W, Cin = x_nhwc.shape
    k, pad = kernel_size, kernel_size // 2
    Ho = (H + 2 * pad - k) // stride + 1
    Wo = (W + 2 * pad - k) // stride + 1
    xp = jnp.pad(x_nhwc, ((0, 0), (pad, pad), (pad, pad), (0, 0)))
    taps = []
    for kh in range(k):
        for kw in range(k):
            taps.append(xp[:, kh:kh + Ho * stride:stride,
                           kw:kw + Wo * stride:stride, :])
    K_raw = k * k * Cin
    K_pad = wmat.shape[0]
    if K_pad != K_raw:
        # Fold the 128-alignment zero pad into the concatenate (no extra pad copy).
        taps.append(jnp.zeros((B, Ho, Wo, K_pad - K_raw), x_nhwc.dtype))
    cols = jnp.concatenate(taps, axis=-1).reshape(B * Ho * Wo, K_pad)
    cols = cols.astype(jnp.bfloat16)
    out = conv_matmul(cols, wmat, bias, out_dtype=out_dtype)
    return out.reshape(B, Ho, Wo, cout)


# ----------------------------------------------------------------------------
# Fully fused pre-norm transformer block: one pallas_call, grid=(B,)
# ----------------------------------------------------------------------------
def _transformer_block_kernel(*refs, num_heads, dh, c, has_group_res):
    it = iter(refs)
    x_ref = next(it)
    ln1_g = next(it); ln1_b = next(it)
    wqkv = next(it); bqkv = next(it)
    wproj = next(it); bproj = next(it)
    ln2_g = next(it); ln2_b = next(it)
    w1 = next(it); b1 = next(it)
    w2 = next(it); b2 = next(it)
    gres_ref = next(it) if has_group_res else None
    o_ref = next(it)
    attn_scr = next(it)

    x = x_ref[0].astype(jnp.float32)                               # (L, C)

    # ---- attention sub-block: LN1 -> QKV matmul -> per-head softmax -> proj ----
    xn = _layernorm(x, ln1_g[...], ln1_b[...], _LN_EPS).astype(jnp.bfloat16)
    qkv = (jnp.dot(xn, wqkv[...], preferred_element_type=jnp.float32)
           + bqkv[...]).astype(jnp.bfloat16)                       # (L, 3C); q pre-scaled

    for h in range(num_heads):                                     # static unroll (<= 8)
        q = qkv[:, h * dh:(h + 1) * dh]
        k = qkv[:, c + h * dh:c + (h + 1) * dh]
        v = qkv[:, 2 * c + h * dh:2 * c + (h + 1) * dh]
        s = jax.lax.dot_general(q, k, (((1,), (1,)), ((), ())),
                                preferred_element_type=jnp.float32)  # (L, L)
        s = s - jnp.max(s, axis=-1, keepdims=True)
        p = jnp.exp(s)
        p = p * pl.reciprocal(jnp.sum(p, axis=-1, keepdims=True), approx=True)
        o = jnp.dot(p.astype(jnp.bfloat16), v,
                    preferred_element_type=jnp.float32)              # (L, dh)
        attn_scr[:, h * dh:(h + 1) * dh] = o.astype(jnp.bfloat16)    # per-head store

    y = (jnp.dot(attn_scr[...], wproj[...], preferred_element_type=jnp.float32)
         + bproj[...]) + x                                           # residual #1 (f32)

    # ---- MLP sub-block: LN2 -> matmul -> GELU -> matmul -> residual ----
    yn = _layernorm(y, ln2_g[...], ln2_b[...], _LN_EPS).astype(jnp.bfloat16)
    h1 = jnp.dot(yn, w1[...], preferred_element_type=jnp.float32) + b1[...]
    h1 = _gelu_tanh(h1).astype(jnp.bfloat16)
    out = (jnp.dot(h1, w2[...], preferred_element_type=jnp.float32)
           + b2[...]) + y                                            # residual #2

    if has_group_res:                                                # fused group residual
        out = out + gres_ref[0].astype(jnp.float32)
    o_ref[0] = out.astype(o_ref.dtype)


def transformer_block(x, blk, *, num_heads, group_residual=None):
    """x: (B, L, C) bf16 -> (B, L, C) bf16.  All weights resident in VMEM."""
    B, L, C = x.shape
    dh = C // num_heads
    hidden = blk["w1"].shape[1]
    has_gres = group_residual is not None

    def xmap(b):
        return (b, 0, 0)

    def wmap(b):
        return (0, 0)

    in_specs = [
        pl.BlockSpec((1, L, C), xmap),                 # x
        pl.BlockSpec((1, C), wmap), pl.BlockSpec((1, C), wmap),        # ln1 g/b
        pl.BlockSpec((C, 3 * C), wmap), pl.BlockSpec((1, 3 * C), wmap),  # qkv
        pl.BlockSpec((C, C), wmap), pl.BlockSpec((1, C), wmap),          # proj
        pl.BlockSpec((1, C), wmap), pl.BlockSpec((1, C), wmap),          # ln2 g/b
        pl.BlockSpec((C, hidden), wmap), pl.BlockSpec((1, hidden), wmap),  # mlp in
        pl.BlockSpec((hidden, C), wmap), pl.BlockSpec((1, C), wmap),       # mlp out
    ]
    args = [x, blk["ln1_g"], blk["ln1_b"], blk["wqkv"], blk["bqkv"],
            blk["wproj"], blk["bproj"], blk["ln2_g"], blk["ln2_b"],
            blk["w1"], blk["b1"], blk["w2"], blk["b2"]]
    if has_gres:
        in_specs.append(pl.BlockSpec((1, L, C), xmap))
        args.append(group_residual)

    kernel = functools.partial(_transformer_block_kernel, num_heads=num_heads,
                               dh=dh, c=C, has_group_res=has_gres)

    return pl.pallas_call(
        kernel,
        out_shape=jax.ShapeDtypeStruct((B, L, C), jnp.bfloat16),
        grid=(B,),
        in_specs=in_specs,
        out_specs=pl.BlockSpec((1, L, C), xmap),
        scratch_shapes=[pltpu.VMEM((L, C), jnp.bfloat16)],   # attention output slab
        compiler_params=pltpu.CompilerParams(
            dimension_semantics=("parallel",),
            vmem_limit_bytes=_VMEM_LIMIT,
        ),
    )(*args)


def res_vit_group(x_nhwc, params, *, num_heads):
    """Residual group of pre-norm transformer blocks: out = blocks(x) + x."""
    B, H, W, C = x_nhwc.shape
    L = H * W
    x0 = x_nhwc.reshape(B, L, C)
    x = x0
    nblk = len(params["blocks"])
    for i, blk in enumerate(params["blocks"]):
        gres = x0 if i == nblk - 1 else None          # group residual fused in last block
        x = transformer_block(x, blk, num_heads=num_heads, group_residual=gres)
    return x.reshape(B, H, W, C)


# ----------------------------------------------------------------------------
# Parameter init (deterministic, synthetic; weights pre-cast to bf16 once)
# ----------------------------------------------------------------------------
def init_conv(key, cin, cout, k):
    fan_in = cin * k * k
    w = jax.random.normal(key, (k, k, cin, cout), jnp.float32) / jnp.sqrt(float(fan_in))
    wmat = w.reshape(k * k * cin, cout)
    K_pad = _round_up(k * k * cin, 128)
    if K_pad != k * k * cin:
        wmat = jnp.pad(wmat, ((0, K_pad - k * k * cin), (0, 0)))
    return {"w": wmat.astype(jnp.bfloat16), "b": jnp.zeros((1, cout), jnp.float32)}


def init_transformer_block(key, dim, num_heads, mlp_ratio, qkv_bias, qk_scale):
    hidden = int(dim * mlp_ratio)
    dh = dim // num_heads
    scale = qk_scale if qk_scale is not None else dh ** -0.5
    k0, k1, k2, k3 = jax.random.split(key, 4)
    s = 0.02
    wqkv = jax.random.normal(k0, (dim, 3 * dim), jnp.float32) * s
    bqkv = jnp.zeros((1, 3 * dim), jnp.float32)       # qkv_bias -> zero-init either way
    # Fold the attention scale into the q columns (math-identical: (q*scale) @ k^T).
    scale_row = jnp.concatenate([jnp.full((dim,), scale, jnp.float32),
                                 jnp.ones((2 * dim,), jnp.float32)])
    wqkv = wqkv * scale_row[None, :]
    bqkv = bqkv * scale_row[None, :]
    return dict(
        ln1_g=jnp.ones((1, dim), jnp.float32), ln1_b=jnp.zeros((1, dim), jnp.float32),
        wqkv=wqkv.astype(jnp.bfloat16), bqkv=bqkv,
        wproj=(jax.random.normal(k1, (dim, dim), jnp.float32) * s).astype(jnp.bfloat16),
        bproj=jnp.zeros((1, dim), jnp.float32),
        ln2_g=jnp.ones((1, dim), jnp.float32), ln2_b=jnp.zeros((1, dim), jnp.float32),
        w1=(jax.random.normal(k2, (dim, hidden), jnp.float32) * s).astype(jnp.bfloat16),
        b1=jnp.zeros((1, hidden), jnp.float32),
        w2=(jax.random.normal(k3, (hidden, dim), jnp.float32) * s).astype(jnp.bfloat16),
        b2=jnp.zeros((1, dim), jnp.float32),
    )


def init_res_vit_group(key, dim, depth, num_heads, mlp_ratio, qkv_bias, qk_scale):
    keys = jax.random.split(key, depth)
    return {"blocks": [init_transformer_block(k, dim, num_heads, mlp_ratio,
                                              qkv_bias, qk_scale) for k in keys]}


class SourceEncoder:
    """JAX/Pallas port of Source_Encoder.

    Channel plan matches the PyTorch module: 3 -> 64 -> 128 -> 192 -> 256,
    each conv stride-2 (k=5 first, then k=3), each followed by a ResViT group.
    """

    def __init__(self, key, depths, num_heads, kernel_size, mlp_ratio,
                 qkv_bias, qk_scale, drop_rate, attn_drop_rate,
                 drop_path_rate, norm_layer):
        del kernel_size, drop_rate, attn_drop_rate        # identity at inference
        del drop_path_rate, norm_layer
        self.num_heads = num_heads
        ks = jax.random.split(key, 8)
        self.layers_0 = init_conv(ks[0], 3, 64, 5)
        self.layers_1 = init_res_vit_group(ks[1], 64, depths[0], num_heads[0],
                                           mlp_ratio, qkv_bias, qk_scale)
        self.layers_2 = init_conv(ks[2], 64, 128, 3)
        self.layers_3 = init_res_vit_group(ks[3], 128, depths[1], num_heads[1],
                                           mlp_ratio, qkv_bias, qk_scale)
        self.layers_4 = init_conv(ks[4], 128, 192, 3)
        self.layers_5 = init_res_vit_group(ks[5], 192, depths[2], num_heads[2],
                                           mlp_ratio, qkv_bias, qk_scale)
        self.layers_6 = init_conv(ks[6], 192, 256, 3)
        self.layers_7 = init_res_vit_group(ks[7], 256, depths[3], num_heads[3],
                                           mlp_ratio, qkv_bias, qk_scale)

    def __call__(self, x_nchw):
        x = jnp.transpose(x_nchw, (0, 2, 3, 1))  # NCHW -> NHWC (bf16 stream after conv1)
        x = conv2d(x, self.layers_0["w"], self.layers_0["b"],
                   kernel_size=5, stride=2, cout=64)
        x = res_vit_group(x, self.layers_1, num_heads=self.num_heads[0])
        x = conv2d(x, self.layers_2["w"], self.layers_2["b"],
                   kernel_size=3, stride=2, cout=128)
        x = res_vit_group(x, self.layers_3, num_heads=self.num_heads[1])
        x = conv2d(x, self.layers_4["w"], self.layers_4["b"],
                   kernel_size=3, stride=2, cout=192)
        x = res_vit_group(x, self.layers_5, num_heads=self.num_heads[2])
        x = conv2d(x, self.layers_6["w"], self.layers_6["b"],
                   kernel_size=3, stride=2, cout=256)
        x = res_vit_group(x, self.layers_7, num_heads=self.num_heads[3])
        return jnp.transpose(x, (0, 3, 1, 2)).astype(jnp.float32)  # NHWC -> NCHW


if __name__ == "__main__":
    key = jax.random.PRNGKey(0)
    k_params, k_input = jax.random.split(key)

    model = SourceEncoder(
        k_params,
        depths=(1, 1, 1, 1),
        num_heads=(4, 4, 6, 8),
        kernel_size=7,
        mlp_ratio=2.0,
        qkv_bias=True,
        qk_scale=None,
        drop_rate=0.0,
        attn_drop_rate=0.0,
        drop_path_rate=0.0,
        norm_layer="layernorm",
    )

    # Small deterministic input, NCHW like the PyTorch forward.
    x = jax.random.normal(k_input, (2, 3, 32, 32), jnp.float32)

    out = model(x)
    out = jax.block_until_ready(out)

    assert out.shape == (2, 256, 2, 2), out.shape
    assert jnp.all(jnp.isfinite(out))
    print("KERNEL_OK")
</pallas_src>

<mosaic_0001>
module attributes {stable_mosaic.version = 11 : i64} {
  func.func @_conv_matmul_kernel(%arg0: i32, %arg1: i32, %arg2: memref<256x128xbf16, #tpu.memory_space<vmem>>, %arg3: memref<128x64xbf16, #tpu.memory_space<vmem>>, %arg4: memref<1x64xf32, #tpu.memory_space<vmem>>, %arg5: memref<256x64xbf16, #tpu.memory_space<vmem>>) attributes {dimension_semantics = [#tpu.dimension_semantics<parallel>, #tpu.dimension_semantics<parallel>], iteration_bounds = array<i64: 2, 1>, scalar_prefetch = 0 : i64, scratch_operands = 0 : i64, tpu.core_type = #tpu.core_type<tc>, window_params = [{transform_indices = @transform_0, window_bounds = array<i64: 256, 128>}, {transform_indices = @transform_1, window_bounds = array<i64: 128, 64>}, {transform_indices = @transform_2, window_bounds = array<i64: 1, 64>}, {transform_indices = @transform_3, window_bounds = array<i64: 256, 64>}]} {
    %c0 = arith.constant 0 : index
    %c0_0 = arith.constant 0 : index
    %0 = vector.load %arg2[%c0, %c0_0] : memref<256x128xbf16, #tpu.memory_space<vmem>>, vector<256x128xbf16>
    %c0_1 = arith.constant 0 : index
    %c0_2 = arith.constant 0 : index
    %1 = vector.load %arg3[%c0_1, %c0_2] : memref<128x64xbf16, #tpu.memory_space<vmem>>, vector<128x64xbf16>
    %cst = arith.constant dense<0.000000e+00> : vector<256x64xf32>
    %2 = tpu.matmul %0, %1, %cst {dimension_numbers = #tpu.dot_dimension_numbers<[1], [0], [0], [1], [0, 0, 1, 1], [], []>} : vector<256x128xbf16>, vector<128x64xbf16>, vector<256x64xf32> -> vector<256x64xf32>
    %c0_3 = arith.constant 0 : index
    %c0_4 = arith.constant 0 : index
    %3 = vector.load %arg4[%c0_3, %c0_4] : memref<1x64xf32, #tpu.memory_space<vmem>>, vector<1x64xf32>
    %4 = vector.broadcast %3 : vector<1x64xf32> to vector<256x64xf32>
    %5 = arith.addf %2, %4 : vector<256x64xf32>
    %6 = arith.truncf %5 : vector<256x64xf32> to vector<256x64xbf16>
    %c0_5 = arith.constant 0 : index
    %c0_6 = arith.constant 0 : index
    %7 = vector.load %arg5[%c0_5, %c0_6] : memref<256x64xbf16, #tpu.memory_space<vmem>>, vector<256x64xbf16>
    tpu.vector_store %arg5[%c0_5, %c0_6], %6 {strides = array<i32>} : memref<256x64xbf16, #tpu.memory_space<vmem>>, vector<256x64xbf16>,
    return
  }
  func.func @transform_0(%arg0: i32, %arg1: i32) -> (i32, i32) {
    %c0_i32 = arith.constant 0 : i32
    %c0_i32_0 = arith.constant 0 : i32
    return %arg0, %c0_i32 : i32, i32
  }
  func.func @transform_1(%arg0: i32, %arg1: i32) -> (i32, i32) {
    %c0_i32 = arith.constant 0 : i32
    %c0_i32_0 = arith.constant 0 : i32
    return %c0_i32, %arg1 : i32, i32
  }
  func.func @transform_2(%arg0: i32, %arg1: i32) -> (i32, i32) {
    %c0_i32 = arith.constant 0 : i32
    %c0_i32_0 = arith.constant 0 : i32
    return %c0_i32, %arg1 : i32, i32
  }
  func.func @transform_3(%arg0: i32, %arg1: i32) -> (i32, i32) {
    %c0_i32 = arith.constant 0 : i32
    return %arg0, %arg1 : i32, i32
  }
}

</mosaic_0001>

<llo_original>
// kernel: tpu_custom_call.1
$region0: #{tpu_custom_call.1}
  #allocation0 [shape = 'u32[]', space=smem, size = 0x4, offset = 0x4, fixed_abs, tag = 'smem constant byte address 0x4 - core index']
  #allocation1 [shape = 'u32[72,128]{1,0:T(1,128)}', space=vmem, size = 0x9000, scoped, tag = 'internal scratch']
  %s0 = inlined_call_operand.hbm [shape: bf16[512,128], index: 0, kind: input, shape index: {}]
  %s1 = inlined_call_operand.vmem [shape: bf16[128,64], index: 1, kind: input, shape index: {}]
  %s2 = inlined_call_operand.vmem [shape: f32[1,64], index: 2, kind: input, shape index: {}]
  %s3 = inlined_call_operand.vmem [shape: bf16[512,64], index: 3, kind: output, shape index: {}]
  %s4 = sld [smem:[#allocation0]]
  $region49: #{tpu_custom_call.1} parent=0
    _
  %s6 = ssub.s32 1, %s4
  %s7 = scalar_select 0, %s6, %s4
  $region1: #{tpu_custom_call.1} parent=0
    #allocation2 [shape = 'u8[131072]{0}', space=vmem, size = 0x20000, scoped, tag = 'input window, operand 0']
    #allocation3 [shape = 's32[2]{0}', space=sflag, size = 0x8, scoped, tag = 'scoped memory for tpu_custom_call.1']
    %8 = vsyncpa [#allocation3], 0
    %s9 = scalar_lea.sflag [#allocation3], 1
    %10 = vsyncpa %s9, 0
    loop: start=0, step=1, limit=4
    $region2: #{tpu_custom_call.1} parent=1 // loop_pre_header
      _
    $region3: #{tpu_custom_call.1} parent=1 // loop_header
      %s12 = sphi 0, %s16
      %p13 = scmp.ge.s32.totalorder %s12, 4
      %s19 = sphi 0, %s31
      %s20 = sphi 0, %s27
      %s21 = sphi 0, %s19
      %s22 = sphi 0, %s20
      %s23 = sphi 0, %s21
      %s24 = sphi 0, %s22
      %s34 = sphi 0, %s36
      %s37 = sphi 0, %s34
      %s38 = sphi 0, %s37
      %s54 = sphi 0, %s38
      %s60 = sphi 0, %s62
      %s63 = sphi 0, %s60
      %s64 = sphi 0, %s63
      %s80 = sphi 0, %s64
      %s86 = sphi 0, %s88
      %s89 = sphi 0, %s86
      %s90 = sphi 0, %s89
      %s106 = sphi 0, %s90
      %s114 = sphi 0, %s116
      %s117 = sphi 0, %s114
      %s118 = sphi 0, %s117
      %s134 = sphi 0, %s118
    $region4: #{tpu_custom_call.1} parent=1 // loop_header_branch
      %15 = sbr.rel (%p13) target = $region8
    $region5: #{tpu_custom_call.1} parent=1 // loop_body
      %s17 = ssub.s32 %s12, 1
      %s18 = ssub.s32 %s12, 2
      %s25 = sadd.s32 1, %s20
      %p26 = scmp.ge.s32.totalorder %s25, 1
      %s27 = scalar_select %p26, 0, %s25
      %s28 = sadd.s32 1, %s19
      %s29 = scalar_select %p26, %s28, %s19
      %p30 = scmp.ge.s32.totalorder %s29, 2
      %s31 = scalar_select %p30, 0, %s29
      %s32 = ssub.s32 %s19, %s31
      %p33 = scmp.eq.s32.totalorder %s32, 0
      %s35 = sadd.s32 %s34, 1
      %s36 = scalar_select %p33, %s34, %s35
      %p39 = pneg %p33
      %p40 = scmp.eq.s32.totalorder %s12, 1
      %p41 = por %p39, %p40
      %p42 = scmp.ne.s32.totalorder %s34, %s37
      %p43 = scmp.eq.s32.totalorder %s12, 0
      %p44 = por %p42, %p43
      %p45 = scmp.ne.s32.totalorder %s34, %s37
      %p46 = scmp.eq.s32.totalorder %s17, 1
      %p47 = por %p45, %p46
      %p48 = scmp.ne.s32.totalorder %s37, %s38
      %p49 = scmp.eq.s32.totalorder %s17, 0
      %p50 = por %p48, %p49
      %p51 = scmp.ne.s32.totalorder %s37, %s38
      %p52 = scmp.eq.s32.totalorder %s18, 1
      %p53 = por %p51, %p52
      %p55 = scmp.ne.s32.totalorder %s38, %s54
      %p56 = scmp.eq.s32.totalorder %s18, 0
      %p57 = por %p55, %p56
      %s58 = ssub.s32 %s20, %s27
      %p59 = scmp.eq.s32.totalorder %s58, 0
      %s61 = sadd.s32 %s60, 1
      %s62 = scalar_select %p59, %s60, %s61
      %p65 = pneg %p59
      %p66 = scmp.eq.s32.totalorder %s12, 1
      %p67 = por %p65, %p66
      %p68 = scmp.ne.s32.totalorder %s60, %s63
      %p69 = scmp.eq.s32.totalorder %s12, 0
      %p70 = por %p68, %p69
      %p71 = scmp.ne.s32.totalorder %s60, %s63
      %p72 = scmp.eq.s32.totalorder %s17, 1
      %p73 = por %p71, %p72
      %p74 = scmp.ne.s32.totalorder %s63, %s64
      %p75 = scmp.eq.s32.totalorder %s17, 0
      %p76 = por %p74, %p75
      %p77 = scmp.ne.s32.totalorder %s63, %s64
      %p78 = scmp.eq.s32.totalorder %s18, 1
      %p79 = por %p77, %p78
      %p81 = scmp.ne.s32.totalorder %s64, %s80
      %p82 = scmp.eq.s32.totalorder %s18, 0
      %p83 = por %p81, %p82
      %s84 = ssub.s32 %s20, %s27
      %p85 = scmp.eq.s32.totalorder %s84, 0
      %s87 = sadd.s32 %s86, 1
      %s88 = scalar_select %p85, %s86, %s87
      %p91 = pneg %p85
      %p92 = scmp.eq.s32.totalorder %s12, 1
      %p93 = por %p91, %p92
      %p94 = scmp.ne.s32.totalorder %s86, %s89
      %p95 = scmp.eq.s32.totalorder %s12, 0
      %p96 = por %p94, %p95
      %p97 = scmp.ne.s32.totalorder %s86, %s89
      %p98 = scmp.eq.s32.totalorder %s17, 1
      %p99 = por %p97, %p98
      %p100 = scmp.ne.s32.totalorder %s89, %s90
      %p101 = scmp.eq.s32.totalorder %s17, 0
      %p102 = por %p100, %p101
      %p103 = scmp.ne.s32.totalorder %s89, %s90
      %p104 = scmp.eq.s32.totalorder %s18, 1
      %p105 = por %p103, %p104
      %p107 = scmp.ne.s32.totalorder %s90, %s106
      %p108 = scmp.eq.s32.totalorder %s18, 0
      %p109 = por %p107, %p108
      %s110 = ssub.s32 %s19, %s31
      %s111 = ssub.s32 %s20, %s27
      %s112 = sor.u32 %s110, %s111
      %p113 = scmp.eq.s32.totalorder %s112, 0
      %s115 = sadd.s32 %s114, 1
      %s116 = scalar_select %p113, %s114, %s115
      %p119 = pneg %p113
      %p120 = scmp.eq.s32.totalorder %s12, 1
      %p121 = por %p119, %p120
      %p122 = scmp.ne.s32.totalorder %s114, %s117
      %p123 = scmp.eq.s32.totalorder %s12, 0
      %p124 = por %p122, %p123
      %p125 = scmp.ne.s32.totalorder %s114, %s117
      %p126 = scmp.eq.s32.totalorder %s17, 1
      %p127 = por %p125, %p126
      %p128 = scmp.ne.s32.totalorder %s117, %s118
      %p129 = scmp.eq.s32.totalorder %s17, 0
      %p130 = por %p128, %p129
      %p131 = scmp.ne.s32.totalorder %s117, %s118
      %p132 = scmp.eq.s32.totalorder %s18, 1
      %p133 = por %p131, %p132
      %p135 = scmp.ne.s32.totalorder %s118, %s134
      %p136 = scmp.eq.s32.totalorder %s18, 0
      %p137 = por %p135, %p136
      %p138 = scmp.le.s32.totalorder 1, %s12
      %p139 = scmp.lt.s32.totalorder %s12, 3
      %p140 = pnand %p138, %p139
      %p141 = pneg %p140
      // Predicated region
      $region9: #{tpu_custom_call.1} parent=5 // pred_check
        _
      $region10: #{tpu_custom_call.1} parent=5 // pred_check_branch
        %143 = sbr.rel (%p140) target = $region12
      $region11: #{tpu_custom_call.1} parent=5 // pred_region
        %s144 = ssub.s32 %s12, 1
        // Predicated region
        $region13: #{tpu_custom_call.1} parent=11 // pred_check
          %p145 = pneg %p76
        $region14: #{tpu_custom_call.1} parent=11 // pred_check_branch
          %147 = sbr.rel (%p145) target = $region16
        $region15: #{tpu_custom_call.1} parent=11 // pred_region
          %p148 = scmp.lt.s32.totalorder %s22, 0
          %s149 = scalar_select %p148, %s22, 0
          %s150 = smul.addr %s149, 4
          %s151 = scalar_lea.vmem %s1, %s150
        $region16: #{tpu_custom_call.1} parent=11 // pred_fallthru
          _
        // Predicated region
        $region17: #{tpu_custom_call.1} parent=11 // pred_check
          %p152 = pneg %p102
        $region18: #{tpu_custom_call.1} parent=11 // pred_check_branch
          %154 = sbr.rel (%p152) target = $region20
        $region19: #{tpu_custom_call.1} parent=11 // pred_region
          %p155 = scmp.lt.s32.totalorder %s22, 0
          %s156 = scalar_select %p155, %s22, 0
          %s157 = scalar_lea.vmem %s2, %s156
        $region20: #{tpu_custom_call.1} parent=11 // pred_fallthru
          _
      $region12: #{tpu_custom_call.1} parent=5 // pred_fallthru
        _
      %p158 = scmp.lt.s32.totalorder %s12, 2
      // Predicated region
      $region21: #{tpu_custom_call.1} parent=5 // pred_check
        %p159 = pneg %p158
      $region22: #{tpu_custom_call.1} parent=5 // pred_check_branch
        %161 = sbr.rel (%p159) target = $region24
      $region23: #{tpu_custom_call.1} parent=5 // pred_region
        // Predicated region
        $region25: #{tpu_custom_call.1} parent=23 // pred_check
          %p162 = pneg %p44
        $region26: #{tpu_custom_call.1} parent=23 // pred_check_branch
          %164 = sbr.rel (%p162) target = $region28
        $region27: #{tpu_custom_call.1} parent=23 // pred_region
          %s165 = sand.u32 %s34, 1
          %s166 = scalar_lea.sflag [#allocation3], %s165
          %s167 = sand.u32 %s34, 1
          %s168 = smul.addr %s167, 128
          %s169 = scalar_lea.vmem [#allocation2], %s168
          %s170 = smul.u32 32, %s19
          %172 = vsyncadd %s166, 0
          %s173 = smul.addr %s170, 4
          %s174 = scalar_lea.hbm %s0, %s173
          %s175 = sshll.u32 %s174, 4
          %s176 = int_to_ptr.hbm [resolvable:$true] %s175
          %s177 = sshll.u32 %s169, 4
          %s178 = int_to_ptr.vmem [resolvable:$true] %s177
          %183 = dma.hbm_to_vmem [thread:$0]  %s176, 2048, %s178, %s166, 64, 64, 4
        $region28: #{tpu_custom_call.1} parent=23 // pred_fallthru
          _
      $region24: #{tpu_custom_call.1} parent=5 // pred_fallthru
        _
      %p184 = scmp.le.s32.totalorder 1, %s12
      %p185 = scmp.lt.s32.totalorder %s12, 3
      %p186 = pnand %p184, %p185
      %p187 = pneg %p186
      // Predicated region
      $region29: #{tpu_custom_call.1} parent=5 // pred_check
        _
      $region30: #{tpu_custom_call.1} parent=5 // pred_check_branch
        %189 = sbr.rel (%p186) target = $region32
      $region31: #{tpu_custom_call.1} parent=5 // pred_region
        %s190 = ssub.s32 %s12, 1
        %s191 = sand.u32 %s37, 1
        %s192 = scalar_lea.sflag [#allocation3], %s191
        %s193 = sand.u32 %s37, 1
        %s194 = smul.addr %s193, 128
        %s195 = scalar_lea.vmem [#allocation2], %s194
        // Predicated region
        $region33: #{tpu_custom_call.1} parent=31 // pred_check
          %p196 = pneg %p50
        $region34: #{tpu_custom_call.1} parent=31 // pred_check_branch
          %198 = sbr.rel (%p196) target = $region36
        $region35: #{tpu_custom_call.1} parent=31 // pred_region
          %200 = dma.done %s192, 2048
        $region36: #{tpu_custom_call.1} parent=31 // pred_fallthru
          _
        %s201 = sand.u32 %s37, 1
        %s202 = scalar_lea.sflag [#allocation3], %s201
        %s203 = sand.u32 %s37, 1
        %s204 = smul.addr %s203, 128
        %s205 = scalar_lea.vmem [#allocation2], %s204
        %p206 = pneg %p50
        %p207 = pneg %p47
        %p208 = scmp.lt.s32.totalorder %s22, 0
        %s209 = scalar_select %p208, %s22, 0
        %s210 = smul.addr %s209, 4
        %s211 = scalar_lea.vmem %s1, %s210
        %p212 = pneg %p76
        %p213 = pneg %p73
        %p214 = scmp.lt.s32.totalorder %s22, 0
        %s215 = scalar_select %p214, %s22, 0
        %s216 = scalar_lea.vmem %s2, %s215
        %p217 = pneg %p102
        %p218 = pneg %p99
        %p219 = pneg %p130
        %p220 = pneg %p127
        %s221 = smul.u32 32, %s21
        %p222 = scmp.lt.s32.totalorder %s221, 63
        %s223 = scalar_select %p222, %s221, 63
        %p224 = scmp.lt.s32.totalorder %s22, 0
        %s225 = scalar_select %p224, %s22, 0
        %s226 = sadd.s32 %s225, %s223
        %s227 = smul.addr %s226, 4
        %s228 = scalar_lea.vmem %s3, %s227
        %s229 = smul.u32 32, %s21
        %p230 = scmp.lt.s32.totalorder %s22, 0
        %s231 = scalar_select %p230, %s22, 0
        %s232 = smul.addr %s231, 4
        %s233 = scalar_lea.vmem %s1, %s232
        %p234 = scmp.lt.s32.totalorder %s22, 0
        %s235 = scalar_select %p234, %s22, 0
        %s236 = scalar_lea.vmem %s2, %s235
        %s237 = smul.u32 32, %s21
        %p238 = scmp.lt.s32.totalorder %s237, 63
        %s239 = scalar_select %p238, %s237, 63
        %p240 = scmp.lt.s32.totalorder %s22, 0
        %s241 = scalar_select %p240, %s22, 0
        %s242 = sadd.s32 %s241, %s239
        %s243 = smul.addr %s242, 4
        %s244 = scalar_lea.vmem %s3, %s243
        %s245 = smul.u32 32, %s21
        %v246 = vld [vmem:[%s195] sm:$0xf]
        %v247 = vld [vmem:[%s195 + $0x4] sm:$0xf]
        %v248 = vld [vmem:[%s195 + $0x8] sm:$0xf]
        %v249 = vld [vmem:[%s195 + $0xc] sm:$0xf]
        %v250 = vld [vmem:[%s195 + $0x10] sm:$0xf]
        %v251 = vld [vmem:[%s195 + $0x14] sm:$0xf]
        %v252 = vld [vmem:[%s195 + $0x18] sm:$0xf]
        %v253 = vld [vmem:[%s195 + $0x1c] sm:$0xf]
        %v254 = vld [vmem:[%s195 + $0x20] sm:$0xf]
        %v255 = vld [vmem:[%s195 + $0x24] sm:$0xf]
        %v256 = vld [vmem:[%s195 + $0x28] sm:$0xf]
        %v257 = vld [vmem:[%s195 + $0x2c] sm:$0xf]
        %v258 = vld [vmem:[%s195 + $0x30] sm:$0xf]
        %v259 = vld [vmem:[%s195 + $0x34] sm:$0xf]
        %v260 = vld [vmem:[%s195 + $0x38] sm:$0xf]
        %v261 = vld [vmem:[%s195 + $0x3c] sm:$0xf]
        %v262 = vld [vmem:[%s195 + $0x40] sm:$0xf]
        %v263 = vld [vmem:[%s195 + $0x44] sm:$0xf]
        %v264 = vld [vmem:[%s195 + $0x48] sm:$0xf]
        %v265 = vld [vmem:[%s195 + $0x4c] sm:$0xf]
        %v266 = vld [vmem:[%s195 + $0x50] sm:$0xf]
        %v267 = vld [vmem:[%s195 + $0x54] sm:$0xf]
        %v268 = vld [vmem:[%s195 + $0x58] sm:$0xf]
        %v269 = vld [vmem:[%s195 + $0x5c] sm:$0xf]
        %v270 = vld [vmem:[%s195 + $0x60] sm:$0xf]
        %v271 = vld [vmem:[%s195 + $0x64] sm:$0xf]
        %v272 = vld [vmem:[%s195 + $0x68] sm:$0xf]
        %v273 = vld [vmem:[%s195 + $0x6c] sm:$0xf]
        %v274 = vld [vmem:[%s195 + $0x70] sm:$0xf]
        %v275 = vld [vmem:[%s195 + $0x74] sm:$0xf]
        %v276 = vld [vmem:[%s195 + $0x78] sm:$0xf]
        %v277 = vld [vmem:[%s195 + $0x7c] sm:$0xf]
        %v278 = vld [vmem:[%s233] sm:$0xf]
        %v279 = vld [vmem:[%s233 + $0x4] sm:$0xf]
        %v280 = vld [vmem:[%s233 + $0x8] sm:$0xf]
        %v281 = vld [vmem:[%s233 + $0xc] sm:$0xf]
        %v282 = vld [vmem:[%s233 + $0x10] sm:$0xf]
        %v283 = vld [vmem:[%s233 + $0x14] sm:$0xf]
        %v284 = vld [vmem:[%s233 + $0x18] sm:$0xf]
        %v285 = vld [vmem:[%s233 + $0x1c] sm:$0xf]
        %v286 = vld [vmem:[%s233 + $0x20] sm:$0xf]
        %v287 = vld [vmem:[%s233 + $0x24] sm:$0xf]
        %v288 = vld [vmem:[%s233 + $0x28] sm:$0xf]
        %v289 = vld [vmem:[%s233 + $0x2c] sm:$0xf]
        %v290 = vld [vmem:[%s233 + $0x30] sm:$0xf]
        %v291 = vld [vmem:[%s233 + $0x34] sm:$0xf]
        %v292 = vld [vmem:[%s233 + $0x38] sm:$0xf]
        %v293 = vld [vmem:[%s233 + $0x3c] sm:$0xf]
        %v294 = vld [vmem:[%s236] sm:$0x1]
        %v296 = vperm.slane %v294, 0
        %v330 = vunpack.c.l.b16 %v246
        %v331 = vunpack.c.l.b16 %v247
        %v332 = vunpack.c.l.b16 %v248
        %v333 = vunpack.c.l.b16 %v249
        %v334 = vunpack.c.l.b16 %v250
        %v335 = vunpack.c.l.b16 %v251
        %v336 = vunpack.c.l.b16 %v252
        %v337 = vunpack.c.l.b16 %v253
        %v338 = vunpack.c.l.b16 %v254
        %v339 = vunpack.c.l.b16 %v255
        %v340 = vunpack.c.l.b16 %v256
        %v341 = vunpack.c.l.b16 %v257
        %v342 = vunpack.c.l.b16 %v258
        %v343 = vunpack.c.l.b16 %v259
        %v344 = vunpack.c.l.b16 %v260
        %v345 = vunpack.c.l.b16 %v261
        %v346 = vunpack.c.l.b16 %v262
        %v347 = vunpack.c.l.b16 %v263
        %v348 = vunpack.c.l.b16 %v264
        %v349 = vunpack.c.l.b16 %v265
        %v350 = vunpack.c.l.b16 %v266
        %v351 = vunpack.c.l.b16 %v267
        %v352 = vunpack.c.l.b16 %v268
        %v353 = vunpack.c.l.b16 %v269
        %v354 = vunpack.c.l.b16 %v270
        %v355 = vunpack.c.l.b16 %v271
        %v356 = vunpack.c.l.b16 %v272
        %v357 = vunpack.c.l.b16 %v273
        %v358 = vunpack.c.l.b16 %v274
        %v359 = vunpack.c.l.b16 %v275
        %v360 = vunpack.c.l.b16 %v276
        %v361 = vunpack.c.l.b16 %v277
        %v362 = vpack.c.b16 %v331, %v330
        %v363 = vpack.c.b16 %v333, %v332
        %v364 = vpack.c.b16 %v335, %v334
        %v365 = vpack.c.b16 %v337, %v336
        %v366 = vpack.c.b16 %v339, %v338
        %v367 = vpack.c.b16 %v341, %v340
        %v368 = vpack.c.b16 %v343, %v342
        %v369 = vpack.c.b16 %v345, %v344
        %v370 = vpack.c.b16 %v347, %v346
        %v371 = vpack.c.b16 %v349, %v348
        %v372 = vpack.c.b16 %v351, %v350
        %v373 = vpack.c.b16 %v353, %v352
        %v374 = vpack.c.b16 %v355, %v354
        %v375 = vpack.c.b16 %v357, %v356
        %v376 = vpack.c.b16 %v359, %v358
        %v377 = vpack.c.b16 %v361, %v360
        %v410 = vunpack.c.l.b16 %v278
        %v411 = vunpack.c.l.b16 %v279
        %v412 = vunpack.c.l.b16 %v280
        %v413 = vunpack.c.l.b16 %v281
        %v414 = vunpack.c.l.b16 %v282
        %v415 = vunpack.c.l.b16 %v283
        %v416 = vunpack.c.l.b16 %v284
        %v417 = vunpack.c.l.b16 %v285
        %v418 = vunpack.c.l.b16 %v286
        %v419 = vunpack.c.l.b16 %v287
        %v420 = vunpack.c.l.b16 %v288
        %v421 = vunpack.c.l.b16 %v289
        %v422 = vunpack.c.l.b16 %v290
        %v423 = vunpack.c.l.b16 %v291
        %v424 = vunpack.c.l.b16 %v292
        %v425 = vunpack.c.l.b16 %v293
        %v426 = vpack.c.b16 %v411, %v410
        %v427 = vpack.c.b16 %v413, %v412
        %v428 = vpack.c.b16 %v415, %v414
        %v429 = vpack.c.b16 %v417, %v416
        %v430 = vpack.c.b16 %v419, %v418
        %v431 = vpack.c.b16 %v421, %v420
        %v432 = vpack.c.b16 %v423, %v422
        %v433 = vpack.c.b16 %v425, %v424
        %442 = vmatpush.bf16.msra.mxu0 %v433
        %443 = vmatpush.bf16.msra.mxu0 %v432
        %444 = vmatpush.bf16.msra.mxu0 %v431
        %445 = vmatpush.bf16.msra.mxu0 %v430
        %446 = vmatpush.bf16.msra.mxu0 %v429
        %447 = vmatpush.bf16.msra.mxu0 %v428
        %448 = vmatpush.bf16.msra.mxu0 %v427
        %449 = vmatpush.bf16.msra.mxu0 %v426
        %450 = vmatmul.bf16.gmra.mxu0 %v362
        %v451 = vpop.f32.mrf.mxu0
        %v452 = vadd.f32 %v296, %v451
        %v453 = vpop.f32.mrf.mxu0
        %v454 = vadd.f32 %v296, %v453
        %455 = vmatmul.bf16.gmra.mxu0 %v363
        %v456 = vpop.f32.mrf.mxu0
        %v457 = vadd.f32 %v296, %v456
        %v458 = vpop.f32.mrf.mxu0
        %v459 = vadd.f32 %v296, %v458
        %460 = vmatmul.bf16.gmra.mxu0 %v364
        %v461 = vpop.f32.mrf.mxu0
        %v462 = vadd.f32 %v296, %v461
        %v463 = vpop.f32.mrf.mxu0
        %v464 = vadd.f32 %v296, %v463
        %465 = vmatmul.bf16.gmra.mxu0 %v365
        %v466 = vpop.f32.mrf.mxu0
        %v467 = vadd.f32 %v296, %v466
        %v468 = vpop.f32.mrf.mxu0
        %v469 = vadd.f32 %v296, %v468
        %470 = vmatmul.bf16.gmra.mxu0 %v366
        %v471 = vpop.f32.mrf.mxu0
        %v472 = vadd.f32 %v296, %v471
        %v473 = vpop.f32.mrf.mxu0
        %v474 = vadd.f32 %v296, %v473
        %475 = vmatmul.bf16.gmra.mxu0 %v367
        %v476 = vpop.f32.mrf.mxu0
        %v477 = vadd.f32 %v296, %v476
        %v478 = vpop.f32.mrf.mxu0
        %v479 = vadd.f32 %v296, %v478
        %480 = vmatmul.bf16.gmra.mxu0 %v368
        %v481 = vpop.f32.mrf.mxu0
        %v482 = vadd.f32 %v296, %v481
        %v483 = vpop.f32.mrf.mxu0
        %v484 = vadd.f32 %v296, %v483
        %485 = vmatmul.bf16.gmra.mxu0 %v369
        %v486 = vpop.f32.mrf.mxu0
        %v487 = vadd.f32 %v296, %v486
        %v488 = vpop.f32.mrf.mxu0
        %v489 = vadd.f32 %v296, %v488
        %490 = vmatmul.bf16.gmra.mxu0 %v370
        %v491 = vpop.f32.mrf.mxu0
        %v492 = vadd.f32 %v296, %v491
        %v493 = vpop.f32.mrf.mxu0
        %v494 = vadd.f32 %v296, %v493
        %495 = vmatmul.bf16.gmra.mxu0 %v371
        %v496 = vpop.f32.mrf.mxu0
        %v497 = vadd.f32 %v296, %v496
        %v498 = vpop.f32.mrf.mxu0
        %v499 = vadd.f32 %v296, %v498
        %500 = vmatmul.bf16.gmra.mxu0 %v372
        %v501 = vpop.f32.mrf.mxu0
        %v502 = vadd.f32 %v296, %v501
        %v503 = vpop.f32.mrf.mxu0
        %v504 = vadd.f32 %v296, %v503
        %505 = vmatmul.bf16.gmra.mxu0 %v373
        %v506 = vpop.f32.mrf.mxu0
        %v507 = vadd.f32 %v296, %v506
        %v508 = vpop.f32.mrf.mxu0
        %v509 = vadd.f32 %v296, %v508
        %510 = vmatmul.bf16.gmra.mxu0 %v374
        %v511 = vpop.f32.mrf.mxu0
        %v512 = vadd.f32 %v296, %v511
        %v513 = vpop.f32.mrf.mxu0
        %v514 = vadd.f32 %v296, %v513
        %515 = vmatmul.bf16.gmra.mxu0 %v375
        %v516 = vpop.f32.mrf.mxu0
        %v517 = vadd.f32 %v296, %v516
        %v518 = vpop.f32.mrf.mxu0
        %v519 = vadd.f32 %v296, %v518
        %520 = vmatmul.bf16.gmra.mxu0 %v376
        %v521 = vpop.f32.mrf.mxu0
        %v522 = vadd.f32 %v296, %v521
        %v523 = vpop.f32.mrf.mxu0
        %v524 = vadd.f32 %v296, %v523
        %525 = vmatmul.bf16.gmra.mxu0 %v377
        %v526 = vpop.f32.mrf.mxu0
        %v527 = vadd.f32 %v296, %v526
        %v528 = vpop.f32.mrf.mxu0
        %v529 = vadd.f32 %v296, %v528
        %530 = vdwg.mxu0
        %v531 = vpack.c.bf16 %v452, %v452
        %v532 = vpack.c.bf16 %v454, %v454
        %v533 = vpack.c.bf16 %v457, %v457
        %v534 = vpack.c.bf16 %v459, %v459
        %v535 = vpack.c.bf16 %v462, %v462
        %v536 = vpack.c.bf16 %v464, %v464
        %v537 = vpack.c.bf16 %v467, %v467
        %v538 = vpack.c.bf16 %v469, %v469
        %v539 = vpack.c.bf16 %v472, %v472
        %v540 = vpack.c.bf16 %v474, %v474
        %v541 = vpack.c.bf16 %v477, %v477
        %v542 = vpack.c.bf16 %v479, %v479
        %v543 = vpack.c.bf16 %v482, %v482
        %v544 = vpack.c.bf16 %v484, %v484
        %v545 = vpack.c.bf16 %v487, %v487
        %v546 = vpack.c.bf16 %v489, %v489
        %v547 = vpack.c.bf16 %v492, %v492
        %v548 = vpack.c.bf16 %v494, %v494
        %v549 = vpack.c.bf16 %v497, %v497
        %v550 = vpack.c.bf16 %v499, %v499
        %v551 = vpack.c.bf16 %v502, %v502
        %v552 = vpack.c.bf16 %v504, %v504
        %v553 = vpack.c.bf16 %v507, %v507
        %v554 = vpack.c.bf16 %v509, %v509
        %v555 = vpack.c.bf16 %v512, %v512
        %v556 = vpack.c.bf16 %v514, %v514
        %v557 = vpack.c.bf16 %v517, %v517
        %v558 = vpack.c.bf16 %v519, %v519
        %v559 = vpack.c.bf16 %v522, %v522
        %v560 = vpack.c.bf16 %v524, %v524
        %v561 = vpack.c.bf16 %v527, %v527
        %v562 = vpack.c.bf16 %v529, %v529
        %vm563 = vcmask 519168
        %564 = vst.msk [vmem:[%s244] sm:$0xf] %vm563, %v531
        %565 = vst.msk [vmem:[%s244 + $0x4] sm:$0xf] %vm563, %v532
        %566 = vst.msk [vmem:[%s244 + $0x8] sm:$0xf] %vm563, %v533
        %567 = vst.msk [vmem:[%s244 + $0xc] sm:$0xf] %vm563, %v534
        %568 = vst.msk [vmem:[%s244 + $0x10] sm:$0xf] %vm563, %v535
        %569 = vst.msk [vmem:[%s244 + $0x14] sm:$0xf] %vm563, %v536
        %570 = vst.msk [vmem:[%s244 + $0x18] sm:$0xf] %vm563, %v537
        %571 = vst.msk [vmem:[%s244 + $0x1c] sm:$0xf] %vm563, %v538
        %572 = vst.msk [vmem:[%s244 + $0x20] sm:$0xf] %vm563, %v539
        %573 = vst.msk [vmem:[%s244 + $0x24] sm:$0xf] %vm563, %v540
        %574 = vst.msk [vmem:[%s244 + $0x28] sm:$0xf] %vm563, %v541
        %575 = vst.msk [vmem:[%s244 + $0x2c] sm:$0xf] %vm563, %v542
        %576 = vst.msk [vmem:[%s244 + $0x30] sm:$0xf] %vm563, %v543
        %577 = vst.msk [vmem:[%s244 + $0x34] sm:$0xf] %vm563, %v544
        %578 = vst.msk [vmem:[%s244 + $0x38] sm:$0xf] %vm563, %v545
        %579 = vst.msk [vmem:[%s244 + $0x3c] sm:$0xf] %vm563, %v546
        %580 = vst.msk [vmem:[%s244 + $0x40] sm:$0xf] %vm563, %v547
        %581 = vst.msk [vmem:[%s244 + $0x44] sm:$0xf] %vm563, %v548
        %582 = vst.msk [vmem:[%s244 + $0x48] sm:$0xf] %vm563, %v549
        %583 = vst.msk [vmem:[%s244 + $0x4c] sm:$0xf] %vm563, %v550
        %584 = vst.msk [vmem:[%s244 + $0x50] sm:$0xf] %vm563, %v551
        %585 = vst.msk [vmem:[%s244 + $0x54] sm:$0xf] %vm563, %v552
        %586 = vst.msk [vmem:[%s244 + $0x58] sm:$0xf] %vm563, %v553
        %587 = vst.msk [vmem:[%s244 + $0x5c] sm:$0xf] %vm563, %v554
        %588 = vst.msk [vmem:[%s244 + $0x60] sm:$0xf] %vm563, %v555
        %589 = vst.msk [vmem:[%s244 + $0x64] sm:$0xf] %vm563, %v556
        %590 = vst.msk [vmem:[%s244 + $0x68] sm:$0xf] %vm563, %v557
        %591 = vst.msk [vmem:[%s244 + $0x6c] sm:$0xf] %vm563, %v558
        %592 = vst.msk [vmem:[%s244 + $0x70] sm:$0xf] %vm563, %v559
        %593 = vst.msk [vmem:[%s244 + $0x74] sm:$0xf] %vm563, %v560
        %594 = vst.msk [vmem:[%s244 + $0x78] sm:$0xf] %vm563, %v561
        %595 = vst.msk [vmem:[%s244 + $0x7c] sm:$0xf] %vm563, %v562
        %s596 = smul.u32 32, %s21
        %p597 = scmp.lt.s32.totalorder %s596, 63
        %s598 = scalar_select %p597, %s596, 63
        %p599 = scmp.lt.s32.totalorder %s22, 0
        %s600 = scalar_select %p599, %s22, 0
        %s601 = sadd.s32 %s600, %s598
        %s602 = smul.addr %s601, 4
        %s603 = scalar_lea.vmem %s3, %s602
        // Predicated region
        $region37: #{tpu_custom_call.1} parent=31 // pred_check
          %p604 = pneg %p127
        $region38: #{tpu_custom_call.1} parent=31 // pred_check_branch
          %606 = sbr.rel (%p604) target = $region40
        $region39: #{tpu_custom_call.1} parent=31 // pred_region
          %s607 = smul.u32 32, %s21
        $region40: #{tpu_custom_call.1} parent=31 // pred_fallthru
          _
      $region32: #{tpu_custom_call.1} parent=5 // pred_fallthru
        _
      %p608 = scmp.le.s32.totalorder 2, %s12
      // Predicated region
      $region41: #{tpu_custom_call.1} parent=5 // pred_check
        %p609 = pneg %p608
      $region42: #{tpu_custom_call.1} parent=5 // pred_check_branch
        %611 = sbr.rel (%p609) target = $region44
      $region43: #{tpu_custom_call.1} parent=5 // pred_region
        %s612 = ssub.s32 %s12, 2
        // Predicated region
        $region45: #{tpu_custom_call.1} parent=43 // pred_check
          %p613 = pneg %p133
        $region46: #{tpu_custom_call.1} parent=43 // pred_check_branch
          %615 = sbr.rel (%p613) target = $region48
        $region47: #{tpu_custom_call.1} parent=43 // pred_region
          %s616 = smul.u32 32, %s23
          %p617 = scmp.lt.s32.totalorder %s616, 63
          %s618 = scalar_select %p617, %s616, 63
          %p619 = scmp.lt.s32.totalorder %s24, 0
          %s620 = scalar_select %p619, %s24, 0
          %s621 = sadd.s32 %s620, %s618
          %s622 = smul.addr %s621, 4
          %s623 = scalar_lea.vmem %s3, %s622
        $region48: #{tpu_custom_call.1} parent=43 // pred_fallthru
          _
      $region44: #{tpu_custom_call.1} parent=5 // pred_fallthru
        _
    $region6: #{tpu_custom_call.1} parent=1 // loop_footer
      %s16 = sadd.s32 1, %s12
    $region7: #{tpu_custom_call.1} parent=1 // loop_footer_branch
      %11 = sbr.rel target = $region3
    $region8: #{tpu_custom_call.1} parent=1 // loop_exit
      _
    %624 = vsyncpa [#allocation3], 1
    %s625 = scalar_lea.sflag [#allocation3], 1
    %626 = vsyncpa %s625, 1

</llo_original>
